<compile_context>
chip_gen: v6e
topology: v6e:2x2x1
jax: 0.10.0
libtpu: 0.0.40
codegen_flags: <defaults>
</compile_context>

<pallas_src>
import functools

import jax
import jax.numpy as jnp
from jax.experimental import pallas as pl
from jax.experimental.pallas import tpu as pltpu


def _round_up(x, m):
    return (x + m - 1) // m * m


@functools.lru_cache(maxsize=1)
def _num_tensorcores():
    """Best-effort: 2 TensorCores per device on v7x / v4-class, else 1."""
    try:
        kind = jax.devices()[0].device_kind.lower()
    except Exception:
        return 1
    return 2 if ("v7" in kind or "v4" in kind) else 1


def biaffine_kernel(x1_ref, x2_ref, wf_ref, l2_ref, ssum_ref, b_ref, o_ref,
                    *, od, n_rep):
    """One batch tile of biaffine attention.

    x1_ref, x2_ref : (TB, D)        VMEM  input tiles
    wf_ref         : (D, O*D + O)   VMEM  fused [W_r | L1] resident weight
    l2_ref         : (D, O)         VMEM  second linear half (transposed)
    ssum_ref       : (O*D, O)       VMEM  0/1 selector summing each D-group
    b_ref          : (1, O)         VMEM  bias
    o_ref          : (TB, O)        VMEM  output tile (unpadded last dim)
    """
    wdt = wf_ref.dtype
    x1 = x1_ref[...]
    x2 = x2_ref[...]

    # Fused x1 matmul: [ t | lin1 ] = x1 @ [ W_r | L1 ]   -> (TB, O*D + O)
    r = jnp.dot(x1.astype(wdt), wf_ref[...], preferred_element_type=jnp.float32)
    t = r[:, :od]                       # (TB, O*D)  bilinear intermediate
    lin1 = r[:, od:]                    # (TB, O)    first linear half

    # Second linear half.
    lin2 = jnp.dot(x2.astype(wdt), l2_ref[...],
                   preferred_element_type=jnp.float32)          # (TB, O)

    # Bilinear: replicate x2 into each O-group (pure lane replication, no MXU),
    # multiply elementwise, then sum each D-wide group with the 0/1 selector.
    x2_rep = jnp.concatenate([x2] * n_rep, axis=-1)             # (TB, O*D)
    bil = jnp.dot(t * x2_rep.astype(jnp.float32), ssum_ref[...],
                  preferred_element_type=jnp.float32)           # (TB, O)

    o_ref[...] = (bil + lin1 + lin2 + b_ref[...]).astype(o_ref.dtype)


def prepare_biaffine_params(w_bilinear, l_weight, l_bias, *,
                            compute_dtype=jnp.float32):
    """One-time parameter preparation (hoisted out of the forward hot path).

    w_bilinear : (O, D, D)  torch.nn.Bilinear weight (bias=False)
    l_weight   : (O, 2*D)   torch.nn.Linear weight
    l_bias     : (O,)       torch.nn.Linear bias
    """
    o, d, d2 = w_bilinear.shape
    assert d == d2, "bilinear weight must be (O, D, D)"
    od = o * d

    w_r = jnp.transpose(w_bilinear, (1, 0, 2)).reshape(d, od)   # W_r[i, o*D+j] = W[o,i,j]
    l1 = l_weight[:, :d].T                                       # (D, O)
    l2 = l_weight[:, d:].T                                       # (D, O)
    w_fused = jnp.concatenate([w_r, l1], axis=1).astype(compute_dtype)  # (D, O*D+O)
    # 0/1 group-sum selector and bias stay f32 (exact; negligible DMA).
    s_sum = jnp.repeat(jnp.eye(o, dtype=jnp.float32), d, axis=0)        # (O*D, O)
    bias = l_bias.reshape(1, o).astype(jnp.float32)                     # (1, O)
    return w_fused, l2.astype(compute_dtype), s_sum, bias


@functools.partial(jax.jit, static_argnames=("block_b",))
def biaffine_forward(x1, x2, w_fused, l2, s_sum, bias, *, block_b=1024):
    """Biaffine attention forward from prepared params.

    x1, x2 : (..., D)  float32
    returns: (..., O)
    """
    d = x1.shape[-1]
    od, o = s_sum.shape
    n_rep = od // d
    lead = x1.shape[:-1]
    dtype = x1.dtype

    x1f = x1.reshape(-1, d)
    x2f = x2.reshape(-1, d)
    n = x1f.shape[0]

    # ---- batch tiling: large tiles; split only helps on multi-TC chips ----
    nb8 = _round_up(max(n, 8), 8)
    tb = min(block_b, nb8)
    if _num_tensorcores() >= 2 and nb8 // tb < 2 and nb8 >= 16:
        # >= 2 grid steps lets dimension_semantics=("parallel",) use both TCs.
        tb = max(8, _round_up(nb8 // 2, 8))
    n_pad = _round_up(nb8, tb)
    if n_pad != n:
        pad = n_pad - n
        x1f = jnp.pad(x1f, ((0, pad), (0, 0)))
        x2f = jnp.pad(x2f, ((0, pad), (0, 0)))

    grid = (n_pad // tb,)
    kernel = functools.partial(biaffine_kernel, od=od, n_rep=n_rep)

    out = pl.pallas_call(
        kernel,
        out_shape=jax.ShapeDtypeStruct((n_pad, o), dtype),
        grid_spec=pltpu.PrefetchScalarGridSpec(
            num_scalar_prefetch=0,
            grid=grid,
            in_specs=[
                pl.BlockSpec((tb, d), lambda i: (i, 0)),        # x1 tile
                pl.BlockSpec((tb, d), lambda i: (i, 0)),        # x2 tile
                pl.BlockSpec((d, od + o), lambda i: (0, 0)),    # [W_r | L1] resident
                pl.BlockSpec((d, o), lambda i: (0, 0)),         # L2 resident
                pl.BlockSpec((od, o), lambda i: (0, 0)),        # S_sum resident
                pl.BlockSpec((1, o), lambda i: (0, 0)),         # bias resident
            ],
            out_specs=pl.BlockSpec((tb, o), lambda i: (i, 0)),
        ),
        compiler_params=pltpu.CompilerParams(
            dimension_semantics=("parallel",),
        ),
    )(x1f, x2f, w_fused, l2, s_sum, bias)

    return out[:n].reshape(*lead, o)


def biaffine_attention(x1, x2, w_bilinear, l_weight, l_bias, *,
                       block_b=1024, compute_dtype=jnp.float32):
    """Convenience wrapper matching the module signature.

    Prefer calling prepare_biaffine_params() once and reusing the result
    across forward calls; this path re-prepares per call.
    """
    params = prepare_biaffine_params(w_bilinear, l_weight, l_bias,
                                     compute_dtype=compute_dtype)
    return biaffine_forward(x1, x2, *params, block_b=block_b)


def reference(x1, x2, w_bilinear, l_weight, l_bias):
    bil = jnp.einsum("ni,oij,nj->no", x1, w_bilinear, x2)
    lin = jnp.concatenate([x1, x2], axis=-1) @ l_weight.T + l_bias
    return bil + lin


if __name__ == "__main__":
    batch, in_features, out_features = 32, 32, 4

    key = jax.random.PRNGKey(0)
    k1, k2, kw, kl, kb = jax.random.split(key, 5)

    x1 = jax.random.normal(k1, (batch, in_features), dtype=jnp.float32)
    x2 = jax.random.normal(k2, (batch, in_features), dtype=jnp.float32)

    # Deterministic parameter init (uniform bounds mimicking torch defaults).
    bil_bound = 1.0 / jnp.sqrt(jnp.float32(in_features))
    w_bilinear = jax.random.uniform(
        kw, (out_features, in_features, in_features),
        minval=-bil_bound, maxval=bil_bound, dtype=jnp.float32)

    lin_bound = 1.0 / jnp.sqrt(jnp.float32(2 * in_features))
    l_weight = jax.random.uniform(
        kl, (out_features, 2 * in_features),
        minval=-lin_bound, maxval=lin_bound, dtype=jnp.float32)
    l_bias = jax.random.uniform(
        kb, (out_features,), minval=-lin_bound, maxval=lin_bound,
        dtype=jnp.float32)

    # Hoisted, one-time parameter prep; reused across forward calls.
    params = prepare_biaffine_params(w_bilinear, l_weight, l_bias)

    out = biaffine_forward(x1, x2, *params)
    out = jax.block_until_ready(out)

    ref = reference(x1, x2, w_bilinear, l_weight, l_bias)
    assert out.shape == (batch, out_features)
    assert jnp.allclose(out, ref, atol=1e-4, rtol=1e-4), "mismatch vs reference"

    print("KERNEL_OK")
</pallas_src>

<mosaic_0001>
module attributes {stable_mosaic.version = 11 : i64} {
  func.func @biaffine_kernel(%arg0: i32, %arg1: memref<32x32xf32, #tpu.memory_space<vmem>>, %arg2: memref<32x32xf32, #tpu.memory_space<vmem>>, %arg3: memref<32x132xf32, #tpu.memory_space<vmem>>, %arg4: memref<32x4xf32, #tpu.memory_space<vmem>>, %arg5: memref<128x4xf32, #tpu.memory_space<vmem>>, %arg6: memref<1x4xf32, #tpu.memory_space<vmem>>, %arg7: memref<32x4xf32, #tpu.memory_space<vmem>>) attributes {dimension_semantics = [#tpu.dimension_semantics<parallel>], iteration_bounds = array<i64: 1>, scalar_prefetch = 0 : i64, scratch_operands = 0 : i64, tpu.core_type = #tpu.core_type<tc>, window_params = [{transform_indices = @transform_0, window_bounds = array<i64: 32, 32>}, {transform_indices = @transform_1, window_bounds = array<i64: 32, 32>}, {pipeline_mode = #tpu.pipeline_mode<synchronous>, transform_indices = @transform_2, window_bounds = array<i64: 32, 132>}, {pipeline_mode = #tpu.pipeline_mode<synchronous>, transform_indices = @transform_3, window_bounds = array<i64: 32, 4>}, {pipeline_mode = #tpu.pipeline_mode<synchronous>, transform_indices = @transform_4, window_bounds = array<i64: 128, 4>}, {pipeline_mode = #tpu.pipeline_mode<synchronous>, transform_indices = @transform_5, window_bounds = array<i64: 1, 4>}, {transform_indices = @transform_6, window_bounds = array<i64: 32, 4>}]} {
    %c0 = arith.constant 0 : index
    %c0_0 = arith.constant 0 : index
    %0 = vector.load %arg1[%c0, %c0_0] : memref<32x32xf32, #tpu.memory_space<vmem>>, vector<32x32xf32>
    %c0_1 = arith.constant 0 : index
    %c0_2 = arith.constant 0 : index
    %1 = vector.load %arg2[%c0_1, %c0_2] : memref<32x32xf32, #tpu.memory_space<vmem>>, vector<32x32xf32>
    %c0_3 = arith.constant 0 : index
    %c0_4 = arith.constant 0 : index
    %2 = vector.load %arg3[%c0_3, %c0_4] : memref<32x132xf32, #tpu.memory_space<vmem>>, vector<32x132xf32>
    %cst = arith.constant dense<0.000000e+00> : vector<32x132xf32>
    %3 = tpu.matmul %0, %2, %cst {dimension_numbers = #tpu.dot_dimension_numbers<[1], [0], [0], [1], [0, 0, 1, 1], [], []>} : vector<32x32xf32>, vector<32x132xf32>, vector<32x132xf32> -> vector<32x132xf32>
    %4 = vector.extract_strided_slice %3 {offsets = [0, 0], sizes = [32, 128], strides = [1, 1]} : vector<32x132xf32> to vector<32x128xf32>
    %5 = vector.extract_strided_slice %3 {offsets = [0, 128], sizes = [32, 4], strides = [1, 1]} : vector<32x132xf32> to vector<32x4xf32>
    %c0_5 = arith.constant 0 : index
    %c0_6 = arith.constant 0 : index
    %6 = vector.load %arg4[%c0_5, %c0_6] : memref<32x4xf32, #tpu.memory_space<vmem>>, vector<32x4xf32>
    %cst_7 = arith.constant dense<0.000000e+00> : vector<32x4xf32>
    %7 = tpu.matmul %1, %6, %cst_7 {dimension_numbers = #tpu.dot_dimension_numbers<[1], [0], [0], [1], [0, 0, 1, 1], [], []>} : vector<32x32xf32>, vector<32x4xf32>, vector<32x4xf32> -> vector<32x4xf32>
    %8 = tpu.concatenate %1, %1, %1, %1 in 1 : vector<32x32xf32>, vector<32x32xf32>, vector<32x32xf32>, vector<32x32xf32> -> vector<32x128xf32>
    %9 = arith.mulf %4, %8 : vector<32x128xf32>
    %c0_8 = arith.constant 0 : index
    %c0_9 = arith.constant 0 : index
    %10 = vector.load %arg5[%c0_8, %c0_9] : memref<128x4xf32, #tpu.memory_space<vmem>>, vector<128x4xf32>
    %cst_10 = arith.constant dense<0.000000e+00> : vector<32x4xf32>
    %11 = tpu.matmul %9, %10, %cst_10 {dimension_numbers = #tpu.dot_dimension_numbers<[1], [0], [0], [1], [0, 0, 1, 1], [], []>} : vector<32x128xf32>, vector<128x4xf32>, vector<32x4xf32> -> vector<32x4xf32>
    %12 = arith.addf %11, %5 : vector<32x4xf32>
    %13 = arith.addf %12, %7 : vector<32x4xf32>
    %c0_11 = arith.constant 0 : index
    %c0_12 = arith.constant 0 : index
    %14 = vector.load %arg6[%c0_11, %c0_12] : memref<1x4xf32, #tpu.memory_space<vmem>>, vector<1x4xf32>
    %15 = vector.broadcast %14 : vector<1x4xf32> to vector<32x4xf32>
    %16 = arith.addf %13, %15 : vector<32x4xf32>
    %c0_13 = arith.constant 0 : index
    %c0_14 = arith.constant 0 : index
    %17 = vector.load %arg7[%c0_13, %c0_14] : memref<32x4xf32, #tpu.memory_space<vmem>>, vector<32x4xf32>
    tpu.vector_store %arg7[%c0_13, %c0_14], %16 {strides = array<i32>} : memref<32x4xf32, #tpu.memory_space<vmem>>, vector<32x4xf32>,
    return
  }
  func.func @transform_0(%arg0: i32) -> (i32, i32) {
    %c0_i32 = arith.constant 0 : i32
    %c0_i32_0 = arith.constant 0 : i32
    return %arg0, %c0_i32 : i32, i32
  }
  func.func @transform_1(%arg0: i32) -> (i32, i32) {
    %c0_i32 = arith.constant 0 : i32
    %c0_i32_0 = arith.constant 0 : i32
    return %arg0, %c0_i32 : i32, i32
  }
  func.func @transform_2(%arg0: i32) -> (i32, i32) {
    %c0_i32 = arith.constant 0 : i32
    %c0_i32_0 = arith.constant 0 : i32
    %c0_i32_1 = arith.constant 0 : i32
    return %c0_i32, %c0_i32_0 : i32, i32
  }
  func.func @transform_3(%arg0: i32) -> (i32, i32) {
    %c0_i32 = arith.constant 0 : i32
    %c0_i32_0 = arith.constant 0 : i32
    %c0_i32_1 = arith.constant 0 : i32
    return %c0_i32, %c0_i32_0 : i32, i32
  }
  func.func @transform_4(%arg0: i32) -> (i32, i32) {
    %c0_i32 = arith.constant 0 : i32
    %c0_i32_0 = arith.constant 0 : i32
    %c0_i32_1 = arith.constant 0 : i32
    return %c0_i32, %c0_i32_0 : i32, i32
  }
  func.func @transform_5(%arg0: i32) -> (i32, i32) {
    %c0_i32 = arith.constant 0 : i32
    %c0_i32_0 = arith.constant 0 : i32
    %c0_i32_1 = arith.constant 0 : i32
    return %c0_i32, %c0_i32_0 : i32, i32
  }
  func.func @transform_6(%arg0: i32) -> (i32, i32) {
    %c0_i32 = arith.constant 0 : i32
    %c0_i32_0 = arith.constant 0 : i32
    return %arg0, %c0_i32 : i32, i32
  }
}

</mosaic_0001>

<llo_original>
// kernel: biaffine_forward.1
$region0: #{biaffine_forward.1}
  #allocation0 [shape = 'u32[]', space=smem, size = 0x4, offset = 0x4, fixed_abs, tag = 'smem constant byte address 0x4 - core index']
  #allocation1 [shape = 'u32[144,128]{1,0:T(1,128)}', space=vmem, size = 0x12000, scoped, tag = 'internal scratch']
  %s0 = inlined_call_operand.vmem [shape: f32[32,32], index: 0, kind: input, shape index: {}]
  %s1 = inlined_call_operand.vmem [shape: f32[32,32], index: 1, kind: input, shape index: {}]
  %s2 = inlined_call_operand.vmem [shape: f32[32,132], index: 2, kind: input, shape index: {}]
  %s3 = inlined_call_operand.vmem [shape: f32[32,4], index: 3, kind: input, shape index: {}]
  %s4 = inlined_call_operand.vmem [shape: f32[128,4], index: 4, kind: input, shape index: {}]
  %s5 = inlined_call_operand.vmem [shape: f32[1,4], index: 5, kind: input, shape index: {}]
  %s6 = inlined_call_operand.vmem [shape: f32[32,4], index: 6, kind: output, shape index: {}]
  %s7 = sld [smem:[#allocation0]]
  $region34: #{biaffine_forward.1} parent=0
    _
  %s9 = ssub.s32 1, %s7
  %s10 = scalar_select 0, %s9, %s7
  // Predicated region
  $region2: #{biaffine_forward.1} parent=0 // pred_check
    _
  $region3: #{biaffine_forward.1} parent=0 // pred_check_branch
    %12 = sbr.rel (0) target = $region5
  $region4: #{biaffine_forward.1} parent=0 // pred_region
    _
  $region5: #{biaffine_forward.1} parent=0 // pred_fallthru
    _
  // Predicated region
  $region6: #{biaffine_forward.1} parent=0 // pred_check
    _
  $region7: #{biaffine_forward.1} parent=0 // pred_check_branch
    %14 = sbr.rel (0) target = $region9
  $region8: #{biaffine_forward.1} parent=0 // pred_region
    _
  $region9: #{biaffine_forward.1} parent=0 // pred_fallthru
    _
  // Predicated region
  $region10: #{biaffine_forward.1} parent=0 // pred_check
    _
  $region11: #{biaffine_forward.1} parent=0 // pred_check_branch
    %16 = sbr.rel (0) target = $region13
  $region12: #{biaffine_forward.1} parent=0 // pred_region
    _
  $region13: #{biaffine_forward.1} parent=0 // pred_fallthru
    _
  // Predicated region
  $region14: #{biaffine_forward.1} parent=0 // pred_check
    _
  $region15: #{biaffine_forward.1} parent=0 // pred_check_branch
    %18 = sbr.rel (0) target = $region17
  $region16: #{biaffine_forward.1} parent=0 // pred_region
    _
  $region17: #{biaffine_forward.1} parent=0 // pred_fallthru
    _
  // Predicated region
  $region18: #{biaffine_forward.1} parent=0 // pred_check
    _
  $region19: #{biaffine_forward.1} parent=0 // pred_check_branch
    %20 = sbr.rel (0) target = $region21
  $region20: #{biaffine_forward.1} parent=0 // pred_region
    _
  $region21: #{biaffine_forward.1} parent=0 // pred_fallthru
    _
  // Predicated region
  $region22: #{biaffine_forward.1} parent=0 // pred_check
    _
  $region23: #{biaffine_forward.1} parent=0 // pred_check_branch
    %22 = sbr.rel (0) target = $region25
  $region24: #{biaffine_forward.1} parent=0 // pred_region
    _
  $region25: #{biaffine_forward.1} parent=0 // pred_fallthru
    _
  %v23 = vld [vmem:[%s0] sm:$0xff]
  %v24 = vld [vmem:[%s0 + $0x8] sm:$0xff]
  %v25 = vld [vmem:[%s0 + $0x10] sm:$0xff]
  %v26 = vld [vmem:[%s0 + $0x18] sm:$0xff]
  %v27 = vld [vmem:[%s1] sm:$0xff]
  %v28 = vld [vmem:[%s1 + $0x8] sm:$0xff]
  %v29 = vld [vmem:[%s1 + $0x10] sm:$0xff]
  %v30 = vld [vmem:[%s1 + $0x18] sm:$0xff]
  %v31 = vld [vmem:[%s2] sm:$0xff]
  %v32 = vld [vmem:[%s2 + $0x8] sm:$0xff]
  %v33 = vld [vmem:[%s2 + $0x10] sm:$0xff]
  %v34 = vld [vmem:[%s2 + $0x18] sm:$0xff]
  %v35 = vld [vmem:[%s2 + $0x20] sm:$0xff]
  %v36 = vld [vmem:[%s2 + $0x28] sm:$0xff]
  %v37 = vld [vmem:[%s2 + $0x30] sm:$0xff]
  %v38 = vld [vmem:[%s2 + $0x38] sm:$0xff]
  %vm39 = vcmask 261120
  %v41 = vsel %vm39, %v23, 0
  %v44 = vsel %vm39, %v24, 0
  %v47 = vsel %vm39, %v25, 0
  %v50 = vsel %vm39, %v26, 0
  %52 = vmatprep.subr.mxu0 0.0
  %53 = vmatpush1.msra.mxu0 0.0
  %54 = vmatprep.subr.mxu0 0.0
  %55 = vmatpush1.msra.mxu0 0.0
  %56 = vmatprep.subr.mxu0 0.0
  %57 = vmatpush1.msra.mxu0 0.0
  %58 = vmatprep.subr.mxu0 0.0
  %59 = vmatpush1.msra.mxu0 0.0
  %60 = vmatprep.subr.mxu0 0.0
  %61 = vmatpush1.msra.mxu0 0.0
  %62 = vmatprep.subr.mxu0 0.0
  %63 = vmatpush1.msra.mxu0 0.0
  %64 = vmatprep.subr.mxu0 0.0
  %65 = vmatpush1.msra.mxu0 0.0
  %66 = vmatprep.subr.mxu0 0.0
  %67 = vmatpush1.msra.mxu0 0.0
  %68 = vmatprep.subr.mxu0 0.0
  %69 = vmatpush1.msra.mxu0 0.0
  %70 = vmatprep.subr.mxu0 0.0
  %71 = vmatpush1.msra.mxu0 0.0
  %72 = vmatprep.subr.mxu0 0.0
  %73 = vmatpush1.msra.mxu0 0.0
  %74 = vmatprep.subr.mxu0 0.0
  %75 = vmatpush1.msra.mxu0 0.0
  %76 = vmatprep.subr.mxu0 %v38
  %77 = vmatpush1.msra.mxu0 %v37
  %78 = vmatprep.subr.mxu0 %v36
  %79 = vmatpush1.msra.mxu0 %v35
  %80 = vmatprep.subr.mxu0 %v34
  %81 = vmatpush1.msra.mxu0 %v33
  %82 = vmatprep.subr.mxu0 %v32
  %83 = vmatpush1.msra.mxu0 %v31
  %84 = vmatprep.subr.mxu0 0.0
  %85 = vmatpush2.msra.mxu0 0.0
  %86 = vmatprep.subr.mxu0 0.0
  %87 = vmatpush2.msra.mxu0 0.0
  %88 = vmatprep.subr.mxu0 0.0
  %89 = vmatpush2.msra.mxu0 0.0
  %90 = vmatprep.subr.mxu0 0.0
  %91 = vmatpush2.msra.mxu0 0.0
  %92 = vmatprep.subr.mxu0 0.0
  %93 = vmatpush2.msra.mxu0 0.0
  %94 = vmatprep.subr.mxu0 0.0
  %95 = vmatpush2.msra.mxu0 0.0
  %96 = vmatprep.subr.mxu0 0.0
  %97 = vmatpush2.msra.mxu0 0.0
  %98 = vmatprep.subr.mxu0 0.0
  %99 = vmatpush2.msra.mxu0 0.0
  %100 = vmatprep.subr.mxu0 0.0
  %101 = vmatpush2.msra.mxu0 0.0
  %102 = vmatprep.subr.mxu0 0.0
  %103 = vmatpush2.msra.mxu0 0.0
  %104 = vmatprep.subr.mxu0 0.0
  %105 = vmatpush2.msra.mxu0 0.0
  %106 = vmatprep.subr.mxu0 0.0
  %107 = vmatpush2.msra.mxu0 0.0
  %108 = vmatprep.subr.mxu0 0.0
  %109 = vmatpush2.msra.mxu0 0.0
  %110 = vmatprep.subr.mxu0 0.0
  %111 = vmatpush2.msra.mxu0 0.0
  %112 = vmatprep.subr.mxu0 0.0
  %113 = vmatpush2.msra.mxu0 0.0
  %114 = vmatprep.subr.mxu0 0.0
  %115 = vmatpush2.msra.mxu0 0.0
  %116 = vmatprep.mubr.f32.mxu0 0.0
  %117 = vmatmul.mubr.f32.gmra.mxu0 %v41
  %v118 = vpop.f32.mrf.mxu0
  %v119 = vadd.f32 0.0, %v118
  %v120 = vpop.f32.mrf.mxu0
  %v121 = vadd.f32 0.0, %v120
  %122 = vmatprep.mubr.f32.mxu0 0.0
  %123 = vmatmul.mubr.f32.gmra.mxu0 %v44
  %v124 = vpop.f32.mrf.mxu0
  %v125 = vadd.f32 0.0, %v124
  %v126 = vpop.f32.mrf.mxu0
  %v127 = vadd.f32 0.0, %v126
  %128 = vmatprep.mubr.f32.mxu0 0.0
  %129 = vmatmul.mubr.f32.gmra.mxu0 %v47
  %v130 = vpop.f32.mrf.mxu0
  %v131 = vadd.f32 0.0, %v130
  %v132 = vpop.f32.mrf.mxu0
  %v133 = vadd.f32 0.0, %v132
  %134 = vmatprep.mubr.f32.mxu0 0.0
  %135 = vmatmul.mubr.f32.gmra.mxu0 %v50
  %v136 = vpop.f32.mrf.mxu0
  %v137 = vadd.f32 0.0, %v136
  %v138 = vpop.f32.mrf.mxu0
  %v139 = vadd.f32 0.0, %v138
  %140 = vdwg.mxu0
  %v141 = vld [vmem:[%s3] sm:$0xff]
  %v142 = vld [vmem:[%s3 + $0x8] sm:$0xff]
  %v143 = vld [vmem:[%s3 + $0x10] sm:$0xff]
  %v144 = vld [vmem:[%s3 + $0x18] sm:$0xff]
  %v146 = vsel %vm39, %v27, 0
  %v149 = vsel %vm39, %v28, 0
  %v152 = vsel %vm39, %v29, 0
  %v155 = vsel %vm39, %v30, 0
  %157 = vmatprep.subr.mxu0 0.0
  %158 = vmatpush1.msra.mxu0 0.0
  %159 = vmatprep.subr.mxu0 0.0
  %160 = vmatpush1.msra.mxu0 0.0
  %161 = vmatprep.subr.mxu0 0.0
  %162 = vmatpush1.msra.mxu0 0.0
  %163 = vmatprep.subr.mxu0 0.0
  %164 = vmatpush1.msra.mxu0 0.0
  %165 = vmatprep.subr.mxu0 0.0
  %166 = vmatpush1.msra.mxu0 0.0
  %167 = vmatprep.subr.mxu0 0.0
  %168 = vmatpush1.msra.mxu0 0.0
  %169 = vmatprep.subr.mxu0 0.0
  %170 = vmatpush1.msra.mxu0 0.0
  %171 = vmatprep.subr.mxu0 0.0
  %172 = vmatpush1.msra.mxu0 0.0
  %173 = vmatprep.subr.mxu0 0.0
  %174 = vmatpush1.msra.mxu0 0.0
  %175 = vmatprep.subr.mxu0 0.0
  %176 = vmatpush1.msra.mxu0 0.0
  %177 = vmatprep.subr.mxu0 0.0
  %178 = vmatpush1.msra.mxu0 0.0
  %179 = vmatprep.subr.mxu0 0.0
  %180 = vmatpush1.msra.mxu0 0.0
  %181 = vmatprep.subr.mxu0 0.0
  %182 = vmatpush1.msra.mxu0 %v144
  %183 = vmatprep.subr.mxu0 0.0
  %184 = vmatpush1.msra.mxu0 %v143
  %185 = vmatprep.subr.mxu0 0.0
  %186 = vmatpush1.msra.mxu0 %v142
  %187 = vmatprep.subr.mxu0 0.0
  %188 = vmatpush1.msra.mxu0 %v141
  %189 = vmatprep.subr.mxu0 0.0
  %190 = vmatpush2.msra.mxu0 0.0
  %191 = vmatprep.subr.mxu0 0.0
  %192 = vmatpush2.msra.mxu0 0.0
  %193 = vmatprep.subr.mxu0 0.0
  %194 = vmatpush2.msra.mxu0 0.0
  %195 = vmatprep.subr.mxu0 0.0
  %196 = vmatpush2.msra.mxu0 0.0
  %197 = vmatprep.subr.mxu0 0.0
  %198 = vmatpush2.msra.mxu0 0.0
  %199 = vmatprep.subr.mxu0 0.0
  %200 = vmatpush2.msra.mxu0 0.0
  %201 = vmatprep.subr.mxu0 0.0
  %202 = vmatpush2.msra.mxu0 0.0
  %203 = vmatprep.subr.mxu0 0.0
  %204 = vmatpush2.msra.mxu0 0.0
  %205 = vmatprep.subr.mxu0 0.0
  %206 = vmatpush2.msra.mxu0 0.0
  %207 = vmatprep.subr.mxu0 0.0
  %208 = vmatpush2.msra.mxu0 0.0
  %209 = vmatprep.subr.mxu0 0.0
  %210 = vmatpush2.msra.mxu0 0.0
  %211 = vmatprep.subr.mxu0 0.0
  %212 = vmatpush2.msra.mxu0 0.0
  %213 = vmatprep.subr.mxu0 0.0
  %214 = vmatpush2.msra.mxu0 0.0
  %215 = vmatprep.subr.mxu0 0.0
  %216 = vmatpush2.msra.mxu0 0.0
  %217 = vmatprep.subr.mxu0 0.0
  %218 = vmatpush2.msra.mxu0 0.0
  %219 = vmatprep.subr.mxu0 0.0
  %220 = vmatpush2.msra.mxu0 0.0
  %221 = vmatprep.mubr.f32.mxu0 0.0
  %222 = vmatmul.mubr.f32.gmra.mxu0 %v146
  %v223 = vpop.f32.mrf.mxu0
  %v224 = vadd.f32 0.0, %v223
  %v225 = vpop.f32.mrf.mxu0
  %226 = vmatprep.mubr.f32.mxu0 0.0
  %227 = vmatmul.mubr.f32.gmra.mxu0 %v149
  %v228 = vpop.f32.mrf.mxu0
  %v229 = vadd.f32 0.0, %v228
  %v230 = vpop.f32.mrf.mxu0
  %231 = vmatprep.mubr.f32.mxu0 0.0
  %232 = vmatmul.mubr.f32.gmra.mxu0 %v152
  %v233 = vpop.f32.mrf.mxu0
  %v234 = vadd.f32 0.0, %v233
  %v235 = vpop.f32.mrf.mxu0
  %236 = vmatprep.mubr.f32.mxu0 0.0
  %237 = vmatmul.mubr.f32.gmra.mxu0 %v155
  %v238 = vpop.f32.mrf.mxu0
  %v239 = vadd.f32 0.0, %v238
  %v240 = vpop.f32.mrf.mxu0
  %241 = vdwg.mxu0
  %242 = vrot.lane.b32.xlu0 %v27, 32
  %v243 = vpop.permute.xlu0 %242
  %244 = vrot.lane.b32.xlu0 %v28, 32
  %v245 = vpop.permute.xlu0 %244
  %246 = vrot.lane.b32.xlu0 %v29, 32
  %v247 = vpop.permute.xlu0 %246
  %248 = vrot.lane.b32.xlu0 %v30, 32
  %v249 = vpop.permute.xlu0 %248
  %254 = vrot.lane.b32.xlu0 %v27, 64
  %v255 = vpop.permute.xlu0 %254
  %256 = vrot.lane.b32.xlu0 %v28, 64
  %v257 = vpop.permute.xlu0 %256
  %258 = vrot.lane.b32.xlu0 %v29, 64
  %v259 = vpop.permute.xlu0 %258
  %260 = vrot.lane.b32.xlu0 %v30, 64
  %v261 = vpop.permute.xlu0 %260
  %266 = vrot.lane.b32.xlu0 %v27, 96
  %v267 = vpop.permute.xlu0 %266
  %268 = vrot.lane.b32.xlu0 %v28, 96
  %v269 = vpop.permute.xlu0 %268
  %270 = vrot.lane.b32.xlu0 %v29, 96
  %v271 = vpop.permute.xlu0 %270
  %272 = vrot.lane.b32.xlu0 %v30, 96
  %v273 = vpop.permute.xlu0 %272
  %v278 = vsel %vm39, %v27, %v243
  %v279 = vsel %vm39, %v28, %v245
  %v280 = vsel %vm39, %v29, %v247
  %v281 = vsel %vm39, %v30, %v249
  %vm282 = vcmask 523264
  %v283 = vsel %vm282, %v278, %v255
  %v284 = vsel %vm282, %v279, %v257
  %v285 = vsel %vm282, %v280, %v259
  %v286 = vsel %vm282, %v281, %v261
  %vm287 = vcmask 785408
  %v288 = vsel %vm287, %v283, %v267
  %v289 = vsel %vm287, %v284, %v269
  %v290 = vsel %vm287, %v285, %v271
  %v291 = vsel %vm287, %v286, %v273
  %v292 = vmul.f32 %v119, %v288
  %v293 = vmul.f32 %v125, %v289
  %v294 = vmul.f32 %v131, %v290
  %v295 = vmul.f32 %v137, %v291
  %v296 = vld [vmem:[%s4] sm:$0xff]
  %v297 = vld [vmem:[%s4 + $0x8] sm:$0xff]
  %v298 = vld [vmem:[%s4 + $0x10] sm:$0xff]
  %v299 = vld [vmem:[%s4 + $0x18] sm:$0xff]
  %v300 = vld [vmem:[%s4 + $0x20] sm:$0xff]
  %v301 = vld [vmem:[%s4 + $0x28] sm:$0xff]
  %v302 = vld [vmem:[%s4 + $0x30] sm:$0xff]
  %v303 = vld [vmem:[%s4 + $0x38] sm:$0xff]
  %v304 = vld [vmem:[%s4 + $0x40] sm:$0xff]
  %v305 = vld [vmem:[%s4 + $0x48] sm:$0xff]
  %v306 = vld [vmem:[%s4 + $0x50] sm:$0xff]
  %v307 = vld [vmem:[%s4 + $0x58] sm:$0xff]
  %v308 = vld [vmem:[%s4 + $0x60] sm:$0xff]
  %v309 = vld [vmem:[%s4 + $0x68] sm:$0xff]
  %v310 = vld [vmem:[%s4 + $0x70] sm:$0xff]
  %v311 = vld [vmem:[%s4 + $0x78] sm:$0xff]
  %312 = vmatprep.subr.mxu0 0.0
  %313 = vmatpush1.msra.mxu0 %v311
  %314 = vmatprep.subr.mxu0 0.0
  %315 = vmatpush1.msra.mxu0 %v310
  %316 = vmatprep.subr.mxu0 0.0
  %317 = vmatpush1.msra.mxu0 %v309
  %318 = vmatprep.subr.mxu0 0.0
  %319 = vmatpush1.msra.mxu0 %v308
  %320 = vmatprep.subr.mxu0 0.0
  %321 = vmatpush1.msra.mxu0 %v307
  %322 = vmatprep.subr.mxu0 0.0
  %323 = vmatpush1.msra.mxu0 %v306
  %324 = vmatprep.subr.mxu0 0.0
  %325 = vmatpush1.msra.mxu0 %v305
  %326 = vmatprep.subr.mxu0 0.0
  %327 = vmatpush1.msra.mxu0 %v304
  %328 = vmatprep.subr.mxu0 0.0
  %329 = vmatpush1.msra.mxu0 %v303
  %330 = vmatprep.subr.mxu0 0.0
  %331 = vmatpush1.msra.mxu0 %v302
  %332 = vmatprep.subr.mxu0 0.0
  %333 = vmatpush1.msra.mxu0 %v301
  %334 = vmatprep.subr.mxu0 0.0
  %335 = vmatpush1.msra.mxu0 %v300
  %336 = vmatprep.subr.mxu0 0.0
  %337 = vmatpush1.msra.mxu0 %v299
  %338 = vmatprep.subr.mxu0 0.0
  %339 = vmatpush1.msra.mxu0 %v298
  %340 = vmatprep.subr.mxu0 0.0
  %341 = vmatpush1.msra.mxu0 %v297
  %342 = vmatprep.subr.mxu0 0.0
  %343 = vmatpush1.msra.mxu0 %v296
  %344 = vmatprep.subr.mxu0 0.0
  %345 = vmatpush2.msra.mxu0 0.0
  %346 = vmatprep.subr.mxu0 0.0
  %347 = vmatpush2.msra.mxu0 0.0
  %348 = vmatprep.subr.mxu0 0.0
  %349 = vmatpush2.msra.mxu0 0.0
  %350 = vmatprep.subr.mxu0 0.0
  %351 = vmatpush2.msra.mxu0 0.0
  %352 = vmatprep.subr.mxu0 0.0
  %353 = vmatpush2.msra.mxu0 0.0
  %354 = vmatprep.subr.mxu0 0.0
  %355 = vmatpush2.msra.mxu0 0.0
  %356 = vmatprep.subr.mxu0 0.0
  %357 = vmatpush2.msra.mxu0 0.0
  %358 = vmatprep.subr.mxu0 0.0
  %359 = vmatpush2.msra.mxu0 0.0
  %360 = vmatprep.subr.mxu0 0.0
  %361 = vmatpush2.msra.mxu0 0.0
  %362 = vmatprep.subr.mxu0 0.0
  %363 = vmatpush2.msra.mxu0 0.0
  %364 = vmatprep.subr.mxu0 0.0
  %365 = vmatpush2.msra.mxu0 0.0
  %366 = vmatprep.subr.mxu0 0.0
  %367 = vmatpush2.msra.mxu0 0.0
  %368 = vmatprep.subr.mxu0 0.0
  %369 = vmatpush2.msra.mxu0 0.0
  %370 = vmatprep.subr.mxu0 0.0
  %371 = vmatpush2.msra.mxu0 0.0
  %372 = vmatprep.subr.mxu0 0.0
  %373 = vmatpush2.msra.mxu0 0.0
  %374 = vmatprep.subr.mxu0 0.0
  %375 = vmatpush2.msra.mxu0 0.0
  %376 = vmatprep.mubr.f32.mxu0 0.0
  %377 = vmatmul.mubr.f32.gmra.mxu0 %v292
  %v378 = vpop.f32.mrf.mxu0
  %v379 = vadd.f32 %v121, %v378
  %v380 = vpop.f32.mrf.mxu0
  %381 = vmatprep.mubr.f32.mxu0 0.0
  %382 = vmatmul.mubr.f32.gmra.mxu0 %v293
  %v383 = vpop.f32.mrf.mxu0
  %v384 = vadd.f32 %v127, %v383
  %v385 = vpop.f32.mrf.mxu0
  %386 = vmatprep.mubr.f32.mxu0 0.0
  %387 = vmatmul.mubr.f32.gmra.mxu0 %v294
  %v388 = vpop.f32.mrf.mxu0
  %v389 = vadd.f32 %v133, %v388
  %v390 = vpop.f32.mrf.mxu0
  %391 = vmatprep.mubr.f32.mxu0 0.0
  %392 = vmatmul.mubr.f32.gmra.mxu0 %v295
  %v393 = vpop.f32.mrf.mxu0
  %v394 = vadd.f32 %v139, %v393
  %v395 = vpop.f32.mrf.mxu0
  %396 = vdwg.mxu0
  %v397 = vadd.f32 %v379, %v224
  %v398 = vadd.f32 %v384, %v229
  %v399 = vadd.f32 %v389, %v234
  %v400 = vadd.f32 %v394, %v239
  %v401 = vld [vmem:[%s5] sm:$0x1]
  %v403 = vlaneseq
  %v404 = vshrl.u32 %v403, 7
  %v405 = vsub.s32 0, %v404
  %v406 = vrot.slane %v401, %v405
  %v408 = vadd.f32 %v397, %v406
  %v409 = vadd.f32 %v398, %v406
  %v410 = vadd.f32 %v399, %v406
  %v411 = vadd.f32 %v400, %v406
  %vm412 = vcmask 31744
  %413 = vst.msk [vmem:[%s6] sm:$0xff] %vm412, %v408
  %414 = vst.msk [vmem:[%s6 + $0x8] sm:$0xff] %vm412, %v409
  %415 = vst.msk [vmem:[%s6 + $0x10] sm:$0xff] %vm412, %v410
  %416 = vst.msk [vmem:[%s6 + $0x18] sm:$0xff] %vm412, %v411
  // Predicated region
  $region26: #{biaffine_forward.1} parent=0 // pred_check
    _
  $region27: #{biaffine_forward.1} parent=0 // pred_check_branch
    %418 = sbr.rel (0) target = $region29
  $region28: #{biaffine_forward.1} parent=0 // pred_region
    _
  $region29: #{biaffine_forward.1} parent=0 // pred_fallthru
    _
  // Predicated region
  $region30: #{biaffine_forward.1} parent=0 // pred_check
    _
  $region31: #{biaffine_forward.1} parent=0 // pred_check_branch
    %420 = sbr.rel (0) target = $region33
  $region32: #{biaffine_forward.1} parent=0 // pred_region
    _
  $region33: #{biaffine_forward.1} parent=0 // pred_fallthru
    _

</llo_original>
